<compile_context>
chip_gen: v7x
topology: tpu7x:2x2x1
jax: 0.10.0
libtpu: 0.0.40
codegen_flags: <defaults>
</compile_context>

<pallas_src>
import functools

import jax
import jax.numpy as jnp
import numpy as np
from jax import lax
from jax.experimental import pallas as pl
from jax.experimental.pallas import tpu as pltpu


def _round_up(x, m):
    return (x + m - 1) // m * m


# ----------------------------- Pallas kernel ------------------------------- #
def hybrid_wf_kernel(x_ref, w1f_ref, b1f_ref, w2f_ref, b2f_ref, out_ref,
                     *, act_dtype, return_log):
    """One batch tile of the fused hybrid forward pass (batch in lanes).

      x    : (TB, N)   int8 spins, natural layout (no host transpose pass)
      pre  = W1f @ x^T + b1f    (2H, TB)   fused amp|phase first layer
                                           (W1f = [W1 | -V1]^T already carries
                                            the -x the phase net sees)
      h    = tanh(pre)          (2H, TB)   bf16 on v6e/v7x, f32 on v5e
      y    = W2f @ h + b2f      (8,  TB)   rows 0/1 = log_amp / phase
      out  = [amp*cos(phase); amp*sin(phase)]   (2, TB)   (wf mode)
           = [log_amp; phase]                   (2, TB)   (log mode)
    """
    # Upcast the int8 spins in-register right before the MXU feed (cheap VPU
    # op; keeps the dominant x HBM stream at 1 byte / element).
    xf = x_ref[...].astype(w1f_ref.dtype)                            # (TB, N)

    # First layer: contract N of both operands (A @ B^T form -> (2H, TB)),
    # f32 accumulation on the MXU.
    pre = lax.dot_general(
        w1f_ref[...], xf,
        dimension_numbers=(((1,), (1,)), ((), ())),
        preferred_element_type=jnp.float32) + b1f_ref[...]           # (2H, TB)

    h = jnp.tanh(pre.astype(act_dtype))                              # (2H, TB)

    # Fused second layer: (8, 2H) block-diagonal weights, f32 accumulation.
    y = jnp.dot(w2f_ref[...], h,
                preferred_element_type=jnp.float32) + b2f_ref[...]   # (8, TB)

    log_amp = y[0:1, :]
    phase = y[1:2, :]
    if return_log:
        out_ref[...] = jnp.concatenate([log_amp, phase], axis=0)
    else:
        amp = jnp.exp(log_amp)
        out_ref[...] = jnp.concatenate(
            [amp * jnp.cos(phase), amp * jnp.sin(phase)], axis=0)


# ----------------------------- tiling helpers ------------------------------- #
_VMEM_LIMIT_BYTES = 48 * 1024 * 1024   # < 64 MiB v7x physical, > every default scoped limit
_VMEM_TILE_BUDGET = 32 * 1024 * 1024   # headroom under the limit for Mosaic scratch


def _activation_dtype(matmul_dtype):
    """bf16 tanh / h only where the VPU/EUP support bf16 (v6e / v7x)."""
    if np.dtype(matmul_dtype) == np.dtype(np.float32):
        return jnp.float32
    try:
        kind = jax.devices()[0].device_kind.lower()
    except Exception:
        return jnp.float32
    if ("v6" in kind) or ("v7" in kind) or ("7x" in kind):
        return jnp.bfloat16
    return jnp.float32            # v5e and older: bf16 adds convert traffic only


def _vmem_need_bytes(tb, n_sites, hidden, matmul_bytes, act_bytes):
    two_h = 2 * hidden
    x_blk = tb * n_sites * 1                      # int8 spins
    out_blk = 2 * tb * 4
    params = (two_h * n_sites * matmul_bytes      # w1f
              + two_h * 4                         # b1f
              + 8 * two_h * act_bytes             # w2f
              + 8 * 4)                            # b2f
    inter = (two_h * tb * 4                       # pre (f32)
             + two_h * tb * act_bytes             # h
             + 8 * tb * 4                         # y
             + 4 * 2 * tb * 4)                    # epilogue temporaries
    return 2 * (x_blk + out_blk + params) + inter     # x2: double buffering


def _pick_tile_b(batch, n_sites, hidden, matmul_bytes, act_bytes):
    """Lane width always a multiple of 128; bounded ragged padding; >=2 grid
    steps once B_pad >= 256 (v7x megacore); VMEM-budgeted tile size."""
    cap = _round_up(max(batch, 128), 128)
    for tb in (8192, 4096, 2048, 1024, 512, 256, 128):
        if tb > cap:
            continue
        b_pad = _round_up(batch, tb)
        steps = b_pad // tb
        if b_pad - batch > max(128, batch // 8):       # bounded padding waste
            continue
        if b_pad >= 256 and steps < 2:                 # keep both v7x TCs busy
            continue
        if _vmem_need_bytes(tb, n_sites, hidden,
                            matmul_bytes, act_bytes) > _VMEM_TILE_BUDGET:
            continue
        return tb, b_pad
    return 128, _round_up(max(batch, 128), 128)


# ------------------------------- wrapper ------------------------------------ #
def hybrid_wavefunction(x, params, *, tile_b=None, matmul_dtype=jnp.bfloat16,
                        return_log=False, min_kernel_elems=0):
    """Hybrid wavefunction forward pass.

    x      : (B, N) spin configs (+-1).  For minimum HBM traffic pass them as
             int8; float inputs are cast to int8 on the host (exact for +-1).
    params : (w1, b1, w2, b2, v1, c1, v2, c2), float32.
    Returns complex64 (B,): amp * exp(i*phase), or log_amp + i*phase when
    return_log=True (avoids f32 exp() overflow for large trained nets).
    """
    B, N = x.shape
    (w1, b1, w2, b2, v1, c1, v2, c2) = params
    H = w1.shape[1]

    # Tiny problems: per-step (~0.35 us) + launch overhead beats any kernel;
    # let XLA fuse the plain expression instead.  Disabled by default so the
    # tests below always exercise the kernel; set min_kernel_elems ~ 1e6 in
    # production.
    if B * N * H < min_kernel_elems:
        xf = x.astype(jnp.float32)
        log_amp = (jnp.tanh(xf @ w1 + b1) @ w2 + b2).reshape(B)
        ph = (jnp.tanh((-xf) @ v1 + c1) @ v2 + c2).reshape(B)
        if return_log:
            return (log_amp + 1j * ph).astype(jnp.complex64)
        return (jnp.exp(log_amp) *
                jnp.exp(1j * ph.astype(jnp.complex64))).astype(jnp.complex64)

    act_dtype = _activation_dtype(matmul_dtype)
    matmul_bytes = np.dtype(matmul_dtype).itemsize
    act_bytes = np.dtype(act_dtype).itemsize

    # ---- fuse amp / phase networks (uses (-x) @ V1 == x @ (-V1)) ----
    w1f = jnp.concatenate([w1, -v1], axis=1).T.astype(matmul_dtype)    # (2H, N)
    b1f = jnp.concatenate([b1, c1], axis=1).T.astype(jnp.float32)      # (2H, 1)
    zH = jnp.zeros((1, H), jnp.float32)
    w2f = jnp.concatenate(
        [jnp.concatenate([w2.T, zH], axis=1),           # row 0: log_amp
         jnp.concatenate([zH, v2.T], axis=1),           # row 1: phase
         jnp.zeros((6, 2 * H), jnp.float32)],           # rows 2..7: padding
        axis=0).astype(act_dtype)                                        # (8, 2H)
    b2f = jnp.concatenate(
        [b2, c2, jnp.zeros((6, 1), jnp.float32)], axis=0).astype(jnp.float32)  # (8, 1)

    # ---- tile selection (lane width always a multiple of 128) ----
    if tile_b is None:
        tile_b, B_pad = _pick_tile_b(B, N, H, matmul_bytes, act_bytes)
    else:
        assert tile_b % 128 == 0, "batch tiles must be 128-lane aligned"
        B_pad = _round_up(B, tile_b)

    # int8 spins: 1 byte/element of x HBM traffic; natural (B, N) layout (no
    # transpose pass); zero-padded rows are computed but sliced off below.
    x_i8 = x if x.dtype == jnp.int8 else x.astype(jnp.int8)
    if B_pad != B:
        x_i8 = jnp.pad(x_i8, ((0, B_pad - B), (0, 0)))

    grid = (B_pad // tile_b,)
    resident = lambda a: pl.BlockSpec(a.shape, lambda i: (0, 0))  # VMEM-resident params
    kernel = functools.partial(hybrid_wf_kernel,
                               act_dtype=act_dtype, return_log=return_log)

    out = pl.pallas_call(
        kernel,
        out_shape=jax.ShapeDtypeStruct((2, B_pad), jnp.float32),
        grid_spec=pltpu.PrefetchScalarGridSpec(
            num_scalar_prefetch=0,
            grid=grid,
            in_specs=[
                pl.BlockSpec((tile_b, N), lambda i: (i, 0)),   # x batch tile
                resident(w1f), resident(b1f), resident(w2f), resident(b2f),
            ],
            out_specs=pl.BlockSpec((2, tile_b), lambda i: (0, i)),
        ),
        compiler_params=pltpu.CompilerParams(
            dimension_semantics=("parallel",),
            vmem_limit_bytes=_VMEM_LIMIT_BYTES),
    )(x_i8, w1f, b1f, w2f, b2f)

    return (out[0, :B] + 1j * out[1, :B]).astype(jnp.complex64)


# ------------------------- pure-JAX reference -------------------------------- #
def hybrid_wavefunction_ref(x, params):
    (w1, b1, w2, b2, v1, c1, v2, c2) = params
    xf = x.astype(jnp.float32)
    amp = jnp.exp(jnp.tanh(xf @ w1 + b1) @ w2 + b2)
    phase = jnp.tanh((-xf) @ v1 + c1) @ v2 + c2
    wf = amp * jnp.exp(1j * phase.astype(jnp.complex64))
    return wf.reshape(x.shape[0]).astype(jnp.complex64)


def _max_rel_err(a, b):
    return float(jnp.max(jnp.abs(a - b) / (jnp.abs(b) + 1e-6)))


# --------------------------------- main -------------------------------------- #
def make_params(key, n_sites, hidden):
    ks = jax.random.split(key, 8)
    s1 = 1.0 / jnp.sqrt(n_sites)
    s2 = 1.0 / jnp.sqrt(hidden)
    w1 = jax.random.normal(ks[0], (n_sites, hidden), jnp.float32) * s1
    b1 = jax.random.normal(ks[1], (1, hidden), jnp.float32) * 0.1
    w2 = jax.random.normal(ks[2], (hidden, 1), jnp.float32) * s2
    b2 = jax.random.normal(ks[3], (1, 1), jnp.float32) * 0.1
    v1 = jax.random.normal(ks[4], (n_sites, hidden), jnp.float32) * s1
    c1 = jax.random.normal(ks[5], (1, hidden), jnp.float32) * 0.1
    v2 = jax.random.normal(ks[6], (hidden, 1), jnp.float32) * s2
    c2 = jax.random.normal(ks[7], (1, 1), jnp.float32) * 0.1
    return (w1, b1, w2, b2, v1, c1, v2, c2)


if __name__ == "__main__":
    key = jax.random.PRNGKey(0)
    k_x, k_p, k_x2 = jax.random.split(key, 3)

    # Small shapes consistent with the module's typical VMC use.
    B, N_SITES, HIDDEN = 16, 16, 32
    x = (2.0 * jax.random.bernoulli(k_x, 0.5, (B, N_SITES)).astype(jnp.float32)
         - 1.0)                                           # spins in {-1, +1}
    params = make_params(k_p, N_SITES, HIDDEN)
    wf_ref = hybrid_wavefunction_ref(x, params)

    # 1) f32 path (f32 matmul operands + f32 activations) vs reference.
    wf_f32 = jax.block_until_ready(
        hybrid_wavefunction(x, params, matmul_dtype=jnp.float32))
    assert wf_f32.shape == (B,) and wf_f32.dtype == jnp.complex64
    assert _max_rel_err(wf_f32, wf_ref) < 1e-2, "f32 path mismatch vs reference"

    # 2) fast path: int8 x, bf16 MXU operands, bf16 tanh/h on v6e/v7x.
    wf_fast = jax.block_until_ready(hybrid_wavefunction(x, params))
    assert wf_fast.shape == (B,) and wf_fast.dtype == jnp.complex64
    assert _max_rel_err(wf_fast, wf_ref) < 4e-2, "fast path mismatch vs reference"

    # 3) tiled + ragged batch: auto tile picks 128 lanes, pads 300 -> 384.
    B2 = 300
    x2 = (2.0 * jax.random.bernoulli(k_x2, 0.5, (B2, N_SITES)).astype(jnp.float32)
          - 1.0)
    wf2 = jax.block_until_ready(hybrid_wavefunction(x2, params))
    wf2_ref = hybrid_wavefunction_ref(x2, params)
    assert wf2.shape == (B2,) and wf2.dtype == jnp.complex64
    assert _max_rel_err(wf2, wf2_ref) < 4e-2, "tiled path mismatch vs reference"

    # 4) log-domain output (overflow-safe mode): exp(log_wf) must match wf.
    log_wf = jax.block_until_ready(
        hybrid_wavefunction(x, params, matmul_dtype=jnp.float32, return_log=True))
    assert log_wf.shape == (B,) and log_wf.dtype == jnp.complex64
    assert _max_rel_err(jnp.exp(log_wf), wf_ref) < 1e-2, "log path mismatch"

    print("KERNEL_OK")
</pallas_src>

<mosaic_0001>
module attributes {stable_mosaic.version = 11 : i64} {
  func.func @hybrid_wf_kernel(%arg0: i32, %arg1: memref<128x16xi8, #tpu.memory_space<vmem>>, %arg2: memref<64x16xf32, #tpu.memory_space<vmem>>, %arg3: memref<64x1xf32, #tpu.memory_space<vmem>>, %arg4: memref<8x64xf32, #tpu.memory_space<vmem>>, %arg5: memref<8x1xf32, #tpu.memory_space<vmem>>, %arg6: memref<2x128xf32, #tpu.memory_space<vmem>>) attributes {dimension_semantics = [#tpu.dimension_semantics<parallel>], iteration_bounds = array<i64: 1>, scalar_prefetch = 0 : i64, scratch_operands = 0 : i64, tpu.core_type = #tpu.core_type<tc>, window_params = [{transform_indices = @transform_0, window_bounds = array<i64: 128, 16>}, {pipeline_mode = #tpu.pipeline_mode<synchronous>, transform_indices = @transform_1, window_bounds = array<i64: 64, 16>}, {pipeline_mode = #tpu.pipeline_mode<synchronous>, transform_indices = @transform_2, window_bounds = array<i64: 64, 1>}, {pipeline_mode = #tpu.pipeline_mode<synchronous>, transform_indices = @transform_3, window_bounds = array<i64: 8, 64>}, {pipeline_mode = #tpu.pipeline_mode<synchronous>, transform_indices = @transform_4, window_bounds = array<i64: 8, 1>}, {transform_indices = @transform_5, window_bounds = array<i64: 2, 128>}]} {
    %c0 = arith.constant 0 : index
    %c0_0 = arith.constant 0 : index
    %0 = vector.load %arg1[%c0, %c0_0] : memref<128x16xi8, #tpu.memory_space<vmem>>, vector<128x16xi8>
    %1 = arith.sitofp %0 : vector<128x16xi8> to vector<128x16xf32>
    %c0_1 = arith.constant 0 : index
    %c0_2 = arith.constant 0 : index
    %2 = vector.load %arg2[%c0_1, %c0_2] : memref<64x16xf32, #tpu.memory_space<vmem>>, vector<64x16xf32>
    %cst = arith.constant dense<0.000000e+00> : vector<64x128xf32>
    %3 = tpu.matmul %2, %1, %cst {dimension_numbers = #tpu.dot_dimension_numbers<[1], [1], [0], [0], [0, 0, 1, 0], [], []>} : vector<64x16xf32>, vector<128x16xf32>, vector<64x128xf32> -> vector<64x128xf32>
    %c0_3 = arith.constant 0 : index
    %c0_4 = arith.constant 0 : index
    %4 = vector.load %arg3[%c0_3, %c0_4] : memref<64x1xf32, #tpu.memory_space<vmem>>, vector<64x1xf32>
    %5 = vector.broadcast %4 : vector<64x1xf32> to vector<64x128xf32>
    %6 = arith.addf %3, %5 : vector<64x128xf32>
    %7 = math.tanh %6 : vector<64x128xf32>
    %c0_5 = arith.constant 0 : index
    %c0_6 = arith.constant 0 : index
    %8 = vector.load %arg4[%c0_5, %c0_6] : memref<8x64xf32, #tpu.memory_space<vmem>>, vector<8x64xf32>
    %cst_7 = arith.constant dense<0.000000e+00> : vector<8x128xf32>
    %9 = tpu.matmul %8, %7, %cst_7 {dimension_numbers = #tpu.dot_dimension_numbers<[1], [0], [0], [1], [0, 0, 1, 1], [], []>} : vector<8x64xf32>, vector<64x128xf32>, vector<8x128xf32> -> vector<8x128xf32>
    %c0_8 = arith.constant 0 : index
    %c0_9 = arith.constant 0 : index
    %10 = vector.load %arg5[%c0_8, %c0_9] : memref<8x1xf32, #tpu.memory_space<vmem>>, vector<8x1xf32>
    %11 = vector.broadcast %10 : vector<8x1xf32> to vector<8x128xf32>
    %12 = arith.addf %9, %11 : vector<8x128xf32>
    %13 = vector.extract_strided_slice %12 {offsets = [0, 0], sizes = [1, 128], strides = [1, 1]} : vector<8x128xf32> to vector<1x128xf32>
    %14 = vector.extract_strided_slice %12 {offsets = [1, 0], sizes = [1, 128], strides = [1, 1]} : vector<8x128xf32> to vector<1x128xf32>
    %15 = math.exp %13 : vector<1x128xf32>
    %16 = math.cos %14 : vector<1x128xf32>
    %17 = arith.mulf %15, %16 : vector<1x128xf32>
    %18 = math.sin %14 : vector<1x128xf32>
    %19 = arith.mulf %15, %18 : vector<1x128xf32>
    %20 = tpu.concatenate %17, %19 in 0 : vector<1x128xf32>, vector<1x128xf32> -> vector<2x128xf32>
    %c0_10 = arith.constant 0 : index
    %c0_11 = arith.constant 0 : index
    %21 = vector.load %arg6[%c0_10, %c0_11] : memref<2x128xf32, #tpu.memory_space<vmem>>, vector<2x128xf32>
    tpu.vector_store %arg6[%c0_10, %c0_11], %20 {strides = array<i32>} : memref<2x128xf32, #tpu.memory_space<vmem>>, vector<2x128xf32>,
    return
  }
  func.func @transform_0(%arg0: i32) -> (i32, i32) {
    %c0_i32 = arith.constant 0 : i32
    %c0_i32_0 = arith.constant 0 : i32
    return %arg0, %c0_i32 : i32, i32
  }
  func.func @transform_1(%arg0: i32) -> (i32, i32) {
    %c0_i32 = arith.constant 0 : i32
    %c0_i32_0 = arith.constant 0 : i32
    %c0_i32_1 = arith.constant 0 : i32
    return %c0_i32, %c0_i32_0 : i32, i32
  }
  func.func @transform_2(%arg0: i32) -> (i32, i32) {
    %c0_i32 = arith.constant 0 : i32
    %c0_i32_0 = arith.constant 0 : i32
    %c0_i32_1 = arith.constant 0 : i32
    return %c0_i32, %c0_i32_0 : i32, i32
  }
  func.func @transform_3(%arg0: i32) -> (i32, i32) {
    %c0_i32 = arith.constant 0 : i32
    %c0_i32_0 = arith.constant 0 : i32
    %c0_i32_1 = arith.constant 0 : i32
    return %c0_i32, %c0_i32_0 : i32, i32
  }
  func.func @transform_4(%arg0: i32) -> (i32, i32) {
    %c0_i32 = arith.constant 0 : i32
    %c0_i32_0 = arith.constant 0 : i32
    %c0_i32_1 = arith.constant 0 : i32
    return %c0_i32, %c0_i32_0 : i32, i32
  }
  func.func @transform_5(%arg0: i32) -> (i32, i32) {
    %c0_i32 = arith.constant 0 : i32
    %c0_i32_0 = arith.constant 0 : i32
    return %c0_i32, %arg0 : i32, i32
  }
}

</mosaic_0001>

<llo_original>
// kernel: tpu_custom_call.1
$region0: #{tpu_custom_call.1}
  #allocation0 [shape = 'u32[]', space=smem, size = 0x4, offset = 0x4, fixed_abs, tag = 'smem constant byte address 0x4 - core index']
  #allocation1 [shape = 'u32[144,128]{1,0:T(1,128)}', space=vmem, size = 0x12000, scoped, tag = 'internal scratch']
  %s0 = inlined_call_operand.vmem [shape: s8[128,16], index: 0, kind: input, shape index: {}]
  %s1 = inlined_call_operand.vmem [shape: f32[64,16], index: 1, kind: input, shape index: {}]
  %s2 = inlined_call_operand.vmem [shape: f32[64,1], index: 2, kind: input, shape index: {}]
  %s3 = inlined_call_operand.vmem [shape: f32[8,64], index: 3, kind: input, shape index: {}]
  %s4 = inlined_call_operand.vmem [shape: f32[8,1], index: 4, kind: input, shape index: {}]
  %s5 = inlined_call_operand.hbm [shape: f32[2,128], index: 5, kind: output, shape index: {}]
  %s6 = sld [smem:[#allocation0]]
  $region30: #{tpu_custom_call.1} parent=0
    _
  %s8 = ssub.s32 1, %s6
  %s9 = scalar_select 0, %s8, %s6
  $region1: #{tpu_custom_call.1} parent=0
    #allocation2 [shape = 'u8[1024]{0}', space=vmem, size = 0x400, scoped, tag = 'output window, operand 0, single buffered']
    #allocation3 [shape = 's32[1]{0}', space=sflag, size = 0x4, scoped, tag = 'scoped memory for tpu_custom_call.1']
    %10 = vsyncpa [#allocation3], 0
    // Predicated region
    $region2: #{tpu_custom_call.1} parent=1 // pred_check
      _
    $region3: #{tpu_custom_call.1} parent=1 // pred_check_branch
      %12 = sbr.rel (0) target = $region5
    $region4: #{tpu_custom_call.1} parent=1 // pred_region
      _
    $region5: #{tpu_custom_call.1} parent=1 // pred_fallthru
      _
    // Predicated region
    $region6: #{tpu_custom_call.1} parent=1 // pred_check
      _
    $region7: #{tpu_custom_call.1} parent=1 // pred_check_branch
      %14 = sbr.rel (0) target = $region9
    $region8: #{tpu_custom_call.1} parent=1 // pred_region
      _
    $region9: #{tpu_custom_call.1} parent=1 // pred_fallthru
      _
    // Predicated region
    $region10: #{tpu_custom_call.1} parent=1 // pred_check
      _
    $region11: #{tpu_custom_call.1} parent=1 // pred_check_branch
      %16 = sbr.rel (0) target = $region13
    $region12: #{tpu_custom_call.1} parent=1 // pred_region
      _
    $region13: #{tpu_custom_call.1} parent=1 // pred_fallthru
      _
    // Predicated region
    $region14: #{tpu_custom_call.1} parent=1 // pred_check
      _
    $region15: #{tpu_custom_call.1} parent=1 // pred_check_branch
      %18 = sbr.rel (0) target = $region17
    $region16: #{tpu_custom_call.1} parent=1 // pred_region
      _
    $region17: #{tpu_custom_call.1} parent=1 // pred_fallthru
      _
    // Predicated region
    $region18: #{tpu_custom_call.1} parent=1 // pred_check
      _
    $region19: #{tpu_custom_call.1} parent=1 // pred_check_branch
      %20 = sbr.rel (0) target = $region21
    $region20: #{tpu_custom_call.1} parent=1 // pred_region
      _
    $region21: #{tpu_custom_call.1} parent=1 // pred_fallthru
      _
    %v21 = vld [vmem:[%s0] sm:$0xff]
    %v22 = vld [vmem:[%s0 + $0x8] sm:$0xff]
    %v23 = vld [vmem:[%s0 + $0x10] sm:$0xff]
    %v24 = vld [vmem:[%s0 + $0x18] sm:$0xff]
    %v25 = vunpack.c.0.s8 %v21
    %v26 = vunpack.c.1.s8 %v21
    %v27 = vunpack.c.2.s8 %v21
    %v28 = vunpack.c.3.s8 %v21
    %v29 = vunpack.c.0.s8 %v22
    %v30 = vunpack.c.1.s8 %v22
    %v31 = vunpack.c.2.s8 %v22
    %v32 = vunpack.c.3.s8 %v22
    %v33 = vunpack.c.0.s8 %v23
    %v34 = vunpack.c.1.s8 %v23
    %v35 = vunpack.c.2.s8 %v23
    %v36 = vunpack.c.3.s8 %v23
    %v37 = vunpack.c.0.s8 %v24
    %v38 = vunpack.c.1.s8 %v24
    %v39 = vunpack.c.2.s8 %v24
    %v40 = vunpack.c.3.s8 %v24
    %v41 = vcvt.s32.f32 %v25
    %v42 = vcvt.s32.f32 %v26
    %v43 = vcvt.s32.f32 %v27
    %v44 = vcvt.s32.f32 %v28
    %v45 = vcvt.s32.f32 %v29
    %v46 = vcvt.s32.f32 %v30
    %v47 = vcvt.s32.f32 %v31
    %v48 = vcvt.s32.f32 %v32
    %v49 = vcvt.s32.f32 %v33
    %v50 = vcvt.s32.f32 %v34
    %v51 = vcvt.s32.f32 %v35
    %v52 = vcvt.s32.f32 %v36
    %v53 = vcvt.s32.f32 %v37
    %v54 = vcvt.s32.f32 %v38
    %v55 = vcvt.s32.f32 %v39
    %v56 = vcvt.s32.f32 %v40
    %v57 = vld [vmem:[%s1] sm:$0xff]
    %v58 = vld [vmem:[%s1 + $0x8] sm:$0xff]
    %v59 = vld [vmem:[%s1 + $0x10] sm:$0xff]
    %v60 = vld [vmem:[%s1 + $0x18] sm:$0xff]
    %v61 = vld [vmem:[%s1 + $0x20] sm:$0xff]
    %v62 = vld [vmem:[%s1 + $0x28] sm:$0xff]
    %v63 = vld [vmem:[%s1 + $0x30] sm:$0xff]
    %v64 = vld [vmem:[%s1 + $0x38] sm:$0xff]
    %v65 = vld [vmem:[%s2] sm:$0xff]
    %v66 = vld [vmem:[%s2 + $0x8] sm:$0xff]
    %v67 = vld [vmem:[%s2 + $0x10] sm:$0xff]
    %v68 = vld [vmem:[%s2 + $0x18] sm:$0xff]
    %v69 = vld [vmem:[%s2 + $0x20] sm:$0xff]
    %v70 = vld [vmem:[%s2 + $0x28] sm:$0xff]
    %v71 = vld [vmem:[%s2 + $0x30] sm:$0xff]
    %v72 = vld [vmem:[%s2 + $0x38] sm:$0xff]
    %74 = vset.pattern.permute.xlu0 0
    %75 = vperm.xlu0 %74, %v65
    %v76 = vpop.permute.xlu0 %75
    %79 = vset.pattern.permute.xlu0 0
    %80 = vperm.xlu0 %79, %v66
    %v81 = vpop.permute.xlu0 %80
    %84 = vset.pattern.permute.xlu0 0
    %85 = vperm.xlu0 %84, %v67
    %v86 = vpop.permute.xlu0 %85
    %89 = vset.pattern.permute.xlu0 0
    %90 = vperm.xlu0 %89, %v68
    %v91 = vpop.permute.xlu0 %90
    %94 = vset.pattern.permute.xlu0 0
    %95 = vperm.xlu0 %94, %v69
    %v96 = vpop.permute.xlu0 %95
    %99 = vset.pattern.permute.xlu0 0
    %100 = vperm.xlu0 %99, %v70
    %v101 = vpop.permute.xlu0 %100
    %104 = vset.pattern.permute.xlu0 0
    %105 = vperm.xlu0 %104, %v71
    %v106 = vpop.permute.xlu0 %105
    %109 = vset.pattern.permute.xlu0 0
    %110 = vperm.xlu0 %109, %v72
    %v111 = vpop.permute.xlu0 %110
    %vm113 = vcmask 130048
    %v115 = vsel %vm113, %v57, 0
    %v118 = vsel %vm113, %v58, 0
    %v121 = vsel %vm113, %v59, 0
    %v124 = vsel %vm113, %v60, 0
    %v127 = vsel %vm113, %v61, 0
    %v130 = vsel %vm113, %v62, 0
    %v133 = vsel %vm113, %v63, 0
    %v136 = vsel %vm113, %v64, 0
    %v139 = vsel %vm113, %v41, 0
    %v142 = vsel %vm113, %v42, 0
    %v145 = vsel %vm113, %v43, 0
    %v148 = vsel %vm113, %v44, 0
    %v151 = vsel %vm113, %v45, 0
    %v154 = vsel %vm113, %v46, 0
    %v157 = vsel %vm113, %v47, 0
    %v160 = vsel %vm113, %v48, 0
    %v163 = vsel %vm113, %v49, 0
    %v166 = vsel %vm113, %v50, 0
    %v169 = vsel %vm113, %v51, 0
    %v172 = vsel %vm113, %v52, 0
    %v175 = vsel %vm113, %v53, 0
    %v178 = vsel %vm113, %v54, 0
    %v181 = vsel %vm113, %v55, 0
    %v184 = vsel %vm113, %v56, 0
    %186 = vmatprep.subr.mxu0 0.0
    %187 = vmatpush1.xpose.msra.mxu0 %v139
    %188 = vmatprep.subr.mxu0 0.0
    %189 = vmatpush1.xpose.msra.mxu0 %v142
    %190 = vmatprep.subr.mxu0 0.0
    %191 = vmatpush1.xpose.msra.mxu0 %v145
    %192 = vmatprep.subr.mxu0 0.0
    %193 = vmatpush1.xpose.msra.mxu0 %v148
    %194 = vmatprep.subr.mxu0 0.0
    %195 = vmatpush1.xpose.msra.mxu0 %v151
    %196 = vmatprep.subr.mxu0 0.0
    %197 = vmatpush1.xpose.msra.mxu0 %v154
    %198 = vmatprep.subr.mxu0 0.0
    %199 = vmatpush1.xpose.msra.mxu0 %v157
    %200 = vmatprep.subr.mxu0 0.0
    %201 = vmatpush1.xpose.msra.mxu0 %v160
    %202 = vmatprep.subr.mxu0 0.0
    %203 = vmatpush1.xpose.msra.mxu0 %v163
    %204 = vmatprep.subr.mxu0 0.0
    %205 = vmatpush1.xpose.msra.mxu0 %v166
    %206 = vmatprep.subr.mxu0 0.0
    %207 = vmatpush1.xpose.msra.mxu0 %v169
    %208 = vmatprep.subr.mxu0 0.0
    %209 = vmatpush1.xpose.msra.mxu0 %v172
    %210 = vmatprep.subr.mxu0 0.0
    %211 = vmatpush1.xpose.msra.mxu0 %v175
    %212 = vmatprep.subr.mxu0 0.0
    %213 = vmatpush1.xpose.msra.mxu0 %v178
    %214 = vmatprep.subr.mxu0 0.0
    %215 = vmatpush1.xpose.msra.mxu0 %v181
    %216 = vmatprep.subr.mxu0 0.0
    %217 = vmatpush1.xpose.msra.mxu0 %v184
    %218 = vmatprep.subr.mxu0 0.0
    %219 = vmatpush1.xpose.msra.mxu0 0.0
    %220 = vmatprep.subr.mxu0 0.0
    %221 = vmatpush1.xpose.msra.mxu0 0.0
    %222 = vmatprep.subr.mxu0 0.0
    %223 = vmatpush1.xpose.msra.mxu0 0.0
    %224 = vmatprep.subr.mxu0 0.0
    %225 = vmatpush1.xpose.msra.mxu0 0.0
    %226 = vmatprep.subr.mxu0 0.0
    %227 = vmatpush1.xpose.msra.mxu0 0.0
    %228 = vmatprep.subr.mxu0 0.0
    %229 = vmatpush1.xpose.msra.mxu0 0.0
    %230 = vmatprep.subr.mxu0 0.0
    %231 = vmatpush1.xpose.msra.mxu0 0.0
    %232 = vmatprep.subr.mxu0 0.0
    %233 = vmatpush1.xpose.msra.mxu0 0.0
    %234 = vmatprep.subr.mxu0 0.0
    %235 = vmatpush1.xpose.msra.mxu0 0.0
    %236 = vmatprep.subr.mxu0 0.0
    %237 = vmatpush1.xpose.msra.mxu0 0.0
    %238 = vmatprep.subr.mxu0 0.0
    %239 = vmatpush1.xpose.msra.mxu0 0.0
    %240 = vmatprep.subr.mxu0 0.0
    %241 = vmatpush1.xpose.msra.mxu0 0.0
    %242 = vmatprep.subr.mxu0 0.0
    %243 = vmatpush1.xpose.msra.mxu0 0.0
    %244 = vmatprep.subr.mxu0 0.0
    %245 = vmatpush1.xpose.msra.mxu0 0.0
    %246 = vmatprep.subr.mxu0 0.0
    %247 = vmatpush1.xpose.msra.mxu0 0.0
    %248 = vmatprep.subr.mxu0 0.0
    %249 = vmatpush1.xpose.msra.mxu0 0.0
    %250 = vmatprep.mubr.f32.mxu0 0.0
    %251 = vmatmul.mubr.f32.gmra.mrb[0].mxu0 %v115
    %v252 = vpop.f32.mrb[0].mxu0
    %v253 = vadd.f32 %v76, %v252
    %v254 = vpop.f32.mrb[0].mxu0
    %255 = vmatprep.mubr.f32.mxu0 0.0
    %256 = vmatmul.mubr.f32.gmra.mrb[0].mxu0 %v118
    %v257 = vpop.f32.mrb[0].mxu0
    %v258 = vadd.f32 %v81, %v257
    %v259 = vpop.f32.mrb[0].mxu0
    %260 = vmatprep.mubr.f32.mxu0 0.0
    %261 = vmatmul.mubr.f32.gmra.mrb[0].mxu0 %v121
    %v262 = vpop.f32.mrb[0].mxu0
    %v263 = vadd.f32 %v86, %v262
    %v264 = vpop.f32.mrb[0].mxu0
    %265 = vmatprep.mubr.f32.mxu0 0.0
    %266 = vmatmul.mubr.f32.gmra.mrb[0].mxu0 %v124
    %v267 = vpop.f32.mrb[0].mxu0
    %v268 = vadd.f32 %v91, %v267
    %v269 = vpop.f32.mrb[0].mxu0
    %270 = vmatprep.mubr.f32.mxu0 0.0
    %271 = vmatmul.mubr.f32.gmra.mrb[0].mxu0 %v127
    %v272 = vpop.f32.mrb[0].mxu0
    %v273 = vadd.f32 %v96, %v272
    %v274 = vpop.f32.mrb[0].mxu0
    %275 = vmatprep.mubr.f32.mxu0 0.0
    %276 = vmatmul.mubr.f32.gmra.mrb[0].mxu0 %v130
    %v277 = vpop.f32.mrb[0].mxu0
    %v278 = vadd.f32 %v101, %v277
    %v279 = vpop.f32.mrb[0].mxu0
    %280 = vmatprep.mubr.f32.mxu0 0.0
    %281 = vmatmul.mubr.f32.gmra.mrb[0].mxu0 %v133
    %v282 = vpop.f32.mrb[0].mxu0
    %v283 = vadd.f32 %v106, %v282
    %v284 = vpop.f32.mrb[0].mxu0
    %285 = vmatprep.mubr.f32.mxu0 0.0
    %286 = vmatmul.mubr.f32.gmra.mrb[0].mxu0 %v136
    %v287 = vpop.f32.mrb[0].mxu0
    %v288 = vadd.f32 %v111, %v287
    %v289 = vpop.f32.mrb[0].mxu0
    %290 = vdwg.mxu0
    %v291 = vtanh.pop %v253
    %v292 = vtanh.pop %v258
    %v293 = vtanh.pop %v263
    %v294 = vtanh.pop %v268
    %v295 = vtanh.pop %v273
    %v296 = vtanh.pop %v278
    %v297 = vtanh.pop %v283
    %v298 = vtanh.pop %v288
    %v299 = vld [vmem:[%s3] sm:$0xff]
    %v300 = vld [vmem:[%s4] sm:$0xff]
    %302 = vset.pattern.permute.xlu0 0
    %303 = vperm.xlu0 %302, %v300
    %v304 = vpop.permute.xlu0 %303
    %vm306 = vcmask 523264
    %v308 = vsel %vm306, %v299, 0
    %310 = vmatprep.subr.mxu0 0.0
    %311 = vmatpush1.msra.mxu0 %v291
    %312 = vmatprep.subr.mxu0 0.0
    %313 = vmatpush1.msra.mxu0 %v292
    %314 = vmatprep.subr.mxu0 0.0
    %315 = vmatpush1.msra.mxu0 %v293
    %316 = vmatprep.subr.mxu0 0.0
    %317 = vmatpush1.msra.mxu0 %v294
    %318 = vmatprep.subr.mxu0 0.0
    %319 = vmatpush1.msra.mxu0 %v295
    %320 = vmatprep.subr.mxu0 0.0
    %321 = vmatpush1.msra.mxu0 %v296
    %322 = vmatprep.subr.mxu0 0.0
    %323 = vmatpush1.msra.mxu0 %v297
    %324 = vmatprep.subr.mxu0 0.0
    %325 = vmatpush1.msra.mxu0 %v298
    %326 = vmatprep.subr.mxu0 0.0
    %327 = vmatpush1.msra.mxu0 0.0
    %328 = vmatprep.subr.mxu0 0.0
    %329 = vmatpush1.msra.mxu0 0.0
    %330 = vmatprep.subr.mxu0 0.0
    %331 = vmatpush1.msra.mxu0 0.0
    %332 = vmatprep.subr.mxu0 0.0
    %333 = vmatpush1.msra.mxu0 0.0
    %334 = vmatprep.subr.mxu0 0.0
    %335 = vmatpush1.msra.mxu0 0.0
    %336 = vmatprep.subr.mxu0 0.0
    %337 = vmatpush1.msra.mxu0 0.0
    %338 = vmatprep.subr.mxu0 0.0
    %339 = vmatpush1.msra.mxu0 0.0
    %340 = vmatprep.subr.mxu0 0.0
    %341 = vmatpush1.msra.mxu0 0.0
    %342 = vmatprep.subr.mxu0 0.0
    %343 = vmatpush1.msra.mxu0 0.0
    %344 = vmatprep.subr.mxu0 0.0
    %345 = vmatpush1.msra.mxu0 0.0
    %346 = vmatprep.subr.mxu0 0.0
    %347 = vmatpush1.msra.mxu0 0.0
    %348 = vmatprep.subr.mxu0 0.0
    %349 = vmatpush1.msra.mxu0 0.0
    %350 = vmatprep.subr.mxu0 0.0
    %351 = vmatpush1.msra.mxu0 0.0
    %352 = vmatprep.subr.mxu0 0.0
    %353 = vmatpush1.msra.mxu0 0.0
    %354 = vmatprep.subr.mxu0 0.0
    %355 = vmatpush1.msra.mxu0 0.0
    %356 = vmatprep.subr.mxu0 0.0
    %357 = vmatpush1.msra.mxu0 0.0
    %358 = vmatprep.subr.mxu0 0.0
    %359 = vmatpush1.msra.mxu0 0.0
    %360 = vmatprep.subr.mxu0 0.0
    %361 = vmatpush1.msra.mxu0 0.0
    %362 = vmatprep.subr.mxu0 0.0
    %363 = vmatpush1.msra.mxu0 0.0
    %364 = vmatprep.subr.mxu0 0.0
    %365 = vmatpush1.msra.mxu0 0.0
    %366 = vmatprep.subr.mxu0 0.0
    %367 = vmatpush1.msra.mxu0 0.0
    %368 = vmatprep.subr.mxu0 0.0
    %369 = vmatpush1.msra.mxu0 0.0
    %370 = vmatprep.subr.mxu0 0.0
    %371 = vmatpush1.msra.mxu0 0.0
    %372 = vmatprep.subr.mxu0 0.0
    %373 = vmatpush1.msra.mxu0 0.0
    %374 = vmatprep.mubr.f32.mxu0 0.0
    %375 = vmatmul.mubr.f32.gmra.mrb[0].mxu0 %v308
    %v376 = vpop.f32.mrb[0].mxu0
    %v377 = vadd.f32 %v304, %v376
    %v378 = vpop.f32.mrb[0].mxu0
    %379 = vdwg.mxu0
    %v380 = vmul.f32 %v377, 1.442695
    %v381 = vpow.pop %v380
    %v382 = vand.u32 2147483647, %v377
    %vm383 = vcmp.le.f32.partialorder %v382, 0.7853982
    %vm384 = vcmp.lt.s32.totalorder %v377, 0
    %v385 = vand.u32 %v377, 2139095040
    %v386 = vshrl.u32 %v385, 23
    %v387 = vsub.s32 %v386, 127
    %v388 = vand.u32 2147483647, %v377
    %v389 = vand.u32 %v388, 8388607
    %v390 = vor.u32 %v389, 8388608
    %v391 = vsub.s32 0, %v390
    %v392 = vadd.s32 %v387, 1
    %vm393 = vcmp.gt.s32.totalorder %v392, 0
    %v394 = vsel %vm393, %v392, 0
    %v395 = vshrl.u32 %v394, 5
    %v396 = vand.u32 %v394, 31
    %v397 = vsub.s32 32, %v396
    %v398 = vshrl.u32 683565275, %v397
    %v399 = vshll.u32 683565275, %v396
    %v400 = vshrl.u32 2475754826, %v397
    %v401 = vor.u32 %v399, %v400
    %v402 = vshll.u32 2475754826, %v396
    %v403 = vshrl.u32 2131351028, %v397
    %v404 = vor.u32 %v402, %v403
    %v405 = vshll.u32 2131351028, %v396
    %v406 = vshrl.u32 2102212464, %v397
    %v407 = vor.u32 %v405, %v406
    %v408 = vshll.u32 2102212464, %v396
    %v409 = vshrl.u32 920167782, %v397
    %v410 = vor.u32 %v408, %v409
    %v411 = vshll.u32 920167782, %v396
    %v412 = vshrl.u32 1326507024, %v397
    %v413 = vor.u32 %v411, %v412
    %vm414 = vcmp.lt.s32.totalorder %v395, 1
    %vm415 = vcmp.lt.s32.totalorder %v395, 2
    %vm416 = vcmp.lt.s32.totalorder %v395, 3
    %vm417 = vcmp.lt.s32.totalorder %v395, 4
    %v418 = vsel %vm414, %v398, %v401
    %v419 = vsel %vm417, %v407, 2102212464
    %v420 = vsel %vm416, %v404, %v419
    %v421 = vsel %vm415, %v418, %v420
    %v422 = vsel %vm414, %v401, %v404
    %v423 = vsel %vm417, %v410, 920167782
    %v424 = vsel %vm416, %v407, %v423
    %v425 = vsel %vm415, %v422, %v424
    %v426 = vsel %vm414, %v404, %v407
    %v427 = vsel %vm417, %v413, 1326507024
    %v428 = vsel %vm416, %v410, %v427
    %v429 = vsel %vm415, %v426, %v428
    %v430 = vshll.u32 %v390, 8
    %v431 = vmul.u32.u64.compose %v430, %v429
    %v432 = vextract.low.u32 %v431
    %v433 = vextract.high.u32 %v431
    %v434 = vmul.u32.u64.compose %v430, %v425
    %v435 = vextract.low.u32 %v434
    %v436 = vextract.high.u32 %v434
    %v437 = vmul.u32 %v430, %v421
    %v438 = vadd.s32 %v433, %v435
    %vm439 = vc.u32 %v433, %v435
    %v440 = vadd.s32 %v436, 1
    %v441 = vsel %vm439, %v440, %v436
    %v442 = vadd.s32 %v437, %v441
    %v443 = vadd.s32 %v442, 536870912
    %v444 = vshrl.u32 %v443, 30
    %v445 = vshll.u32 %v444, 30
    %v446 = vsub.s32 %v442, %v445
    %vm447 = vcmp.lt.s32.totalorder %v446, 0
    %v448 = vsub.s32 0, %v446
    %v449 = vsel %vm447, %v448, %v446
    %v450 = vclz %v449
    %v451 = vsub.s32 %v450, 2
    %vm452 = vcmp.gt.s32.totalorder 0, %v451
    %v453 = vsel %vm452, 0, %v451
    %v454 = vsub.s32 32, %v453
    %v455 = vshll.u32 %v446, %v453
    %v456 = vshrl.u32 %v438, %v454
    %v457 = vor.u32 %v455, %v456
    %v458 = vsub.s32 4294967266, %v453
    %v459 = vadd.s32 %v458, 127
    %v460 = vshll.u32 %v459, 23
    %v461 = vor.u32 4788187, %v460
    %v462 = vand.u32 2147483647, %v461
    %v464 = vcvt.s32.f32 %v457
    %v465 = vmul.f32 %v464, %v462
    %v466 = vxor.u32 %v465, 2147483648
    %v467 = vsel %vm384, %v466, %v465
    %v468 = vsub.s32 4, %v444
    %v469 = vsel %vm384, %v468, %v444
    %v470 = vsel %vm383, %v377, %v467
    %v471 = vsel %vm383, 0, %v469
    %v472 = vcosq.f32.pop %v470
    %v473 = vsinq.f32.pop %v470
    %vm474 = vweird.f32 %v377
    %v475 = vand.u32 %v471, 3
    %vm476 = vcmp.lt.s32.totalorder %v475, 2
    %vm477 = vcmp.eq.s32.totalorder %v475, 0
    %v478 = vxor.u32 %v473, 2147483648
    %v479 = vsel %vm477, %v472, %v478
    %vm480 = vcmp.eq.s32.totalorder %v475, 2
    %v481 = vxor.u32 %v472, 2147483648
    %v482 = vsel %vm480, %v481, %v473
    %v483 = vsel %vm476, %v479, %v482
    %v484 = vsel %vm474, nan, %v483
    %v486 = vrot.slane %v484, 1
    %v488 = vmul.f32 %v381, %v486
    %v489 = vand.u32 2147483647, %v377
    %vm490 = vcmp.le.f32.partialorder %v489, 0.7853982
    %vm491 = vcmp.lt.s32.totalorder %v377, 0
    %v492 = vand.u32 %v377, 2139095040
    %v493 = vshrl.u32 %v492, 23
    %v494 = vsub.s32 %v493, 127
    %v495 = vand.u32 2147483647, %v377
    %v496 = vand.u32 %v495, 8388607
    %v497 = vor.u32 %v496, 8388608
    %v498 = vsub.s32 0, %v497
    %v499 = vadd.s32 %v494, 1
    %vm500 = vcmp.gt.s32.totalorder %v499, 0
    %v501 = vsel %vm500, %v499, 0
    %v502 = vshrl.u32 %v501, 5
    %v503 = vand.u32 %v501, 31
    %v504 = vsub.s32 32, %v503
    %v505 = vshrl.u32 683565275, %v504
    %v506 = vshll.u32 683565275, %v503
    %v507 = vshrl.u32 2475754826, %v504
    %v508 = vor.u32 %v506, %v507
    %v509 = vshll.u32 2475754826, %v503
    %v510 = vshrl.u32 2131351028, %v504
    %v511 = vor.u32 %v509, %v510
    %v512 = vshll.u32 2131351028, %v503
    %v513 = vshrl.u32 2102212464, %v504
    %v514 = vor.u32 %v512, %v513
    %v515 = vshll.u32 2102212464, %v503
    %v516 = vshrl.u32 920167782, %v504
    %v517 = vor.u32 %v515, %v516
    %v518 = vshll.u32 920167782, %v503
    %v519 = vshrl.u32 1326507024, %v504
    %v520 = vor.u32 %v518, %v519
    %vm521 = vcmp.lt.s32.totalorder %v502, 1
    %vm522 = vcmp.lt.s32.totalorder %v502, 2
    %vm523 = vcmp.lt.s32.totalorder %v502, 3
    %vm524 = vcmp.lt.s32.totalorder %v502, 4
    %v525 = vsel %vm521, %v505, %v508
    %v526 = vsel %vm524, %v514, 2102212464
    %v527 = vsel %vm523, %v511, %v526
    %v528 = vsel %vm522, %v525, %v527
    %v529 = vsel %vm521, %v508, %v511
    %v530 = vsel %vm524, %v517, 920167782
    %v531 = vsel %vm523, %v514, %v530
    %v532 = vsel %vm522, %v529, %v531
    %v533 = vsel %vm521, %v511, %v514
    %v534 = vsel %vm524, %v520, 1326507024
    %v535 = vsel %vm523, %v517, %v534
    %v536 = vsel %vm522, %v533, %v535
    %v537 = vshll.u32 %v497, 8
    %v538 = vmul.u32.u64.compose %v537, %v536
    %v539 = vextract.low.u32 %v538
    %v540 = vextract.high.u32 %v538
    %v541 = vmul.u32.u64.compose %v537, %v532
    %v542 = vextract.low.u32 %v541
    %v543 = vextract.high.u32 %v541
    %v544 = vmul.u32 %v537, %v528
    %v545 = vadd.s32 %v540, %v542
    %vm546 = vc.u32 %v540, %v542
    %v547 = vadd.s32 %v543, 1
    %v548 = vsel %vm546, %v547, %v543
    %v549 = vadd.s32 %v544, %v548
    %v550 = vadd.s32 %v549, 536870912
    %v551 = vshrl.u32 %v550, 30
    %v552 = vshll.u32 %v551, 30
    %v553 = vsub.s32 %v549, %v552
    %vm554 = vcmp.lt.s32.totalorder %v553, 0
    %v555 = vsub.s32 0, %v553
    %v556 = vsel %vm554, %v555, %v553
    %v557 = vclz %v556
    %v558 = vsub.s32 %v557, 2
    %vm559 = vcmp.gt.s32.totalorder 0, %v558
    %v560 = vsel %vm559, 0, %v558
    %v561 = vsub.s32 32, %v560
    %v562 = vshll.u32 %v553, %v560
    %v563 = vshrl.u32 %v545, %v561
    %v564 = vor.u32 %v562, %v563
    %v565 = vsub.s32 4294967266, %v560
    %v566 = vadd.s32 %v565, 127
    %v567 = vshll.u32 %v566, 23
    %v568 = vor.u32 4788187, %v567
    %v569 = vand.u32 2147483647, %v568
    %v571 = vcvt.s32.f32 %v564
    %v572 = vmul.f32 %v571, %v569
    %v573 = vxor.u32 %v572, 2147483648
    %v574 = vsel %vm491, %v573, %v572
    %v575 = vsub.s32 4, %v551
    %v576 = vsel %vm491, %v575, %v551
    %v577 = vsel %vm490, %v377, %v574
    %v578 = vsel %vm490, 0, %v576
    %v579 = vcosq.f32.pop %v577
    %v580 = vsinq.f32.pop %v577
    %vm581 = vweird.f32 %v377
    %v582 = vadd.s32 %v578, 3
    %v583 = vand.u32 %v582, 3
    %vm584 = vcmp.lt.s32.totalorder %v583, 2
    %vm585 = vcmp.eq.s32.totalorder %v583, 0
    %v586 = vxor.u32 %v580, 2147483648
    %v587 = vsel %vm585, %v579, %v586
    %vm588 = vcmp.eq.s32.totalorder %v583, 2
    %v589 = vxor.u32 %v579, 2147483648
    %v590 = vsel %vm588, %v589, %v580
    %v591 = vsel %vm584, %v587, %v590
    %v592 = vsel %vm581, nan, %v591
    %v594 = vrot.slane %v592, 1
    %v596 = vmul.f32 %v381, %v594
    %v598 = vrot.slane %v596, 7
    %vm600 = vcmask 1040384
    %v601 = vsel %vm600, %v488, %v598
    %602 = vst [vmem:[#allocation2] sm:$0x3] %v601
    // Predicated region
    $region22: #{tpu_custom_call.1} parent=1 // pred_check
      _
    $region23: #{tpu_custom_call.1} parent=1 // pred_check_branch
      %604 = sbr.rel (0) target = $region25
    $region24: #{tpu_custom_call.1} parent=1 // pred_region
      %s606 = ssub.s32 32, 32
      %607 = vsyncadd [#allocation3], %s606
      %s609 = sshll.u32 [#allocation2], 4
      %s610 = int_to_ptr.vmem [resolvable:$true] %s609
      %612 = dma.vmem_to_hbm [thread:$0]  %s610, 32, %s5, [#allocation3]
    $region25: #{tpu_custom_call.1} parent=1 // pred_fallthru
      _
    // Predicated region
    $region26: #{tpu_custom_call.1} parent=1 // pred_check
      _
    $region27: #{tpu_custom_call.1} parent=1 // pred_check_branch
      %614 = sbr.rel (0) target = $region29
    $region28: #{tpu_custom_call.1} parent=1 // pred_region
      %615 = dma.done [#allocation3], 32
    $region29: #{tpu_custom_call.1} parent=1 // pred_fallthru
      _
    %616 = vsyncpa [#allocation3], 1

</llo_original>
